<compile_context>
chip_gen: v5e
topology: v5e:2x2
jax: 0.10.0
libtpu: 0.0.40
codegen_flags: <defaults>
</compile_context>

<pallas_src>
import functools

import jax
import jax.numpy as jnp
from jax import lax
from jax.experimental import pallas as pl
from jax.experimental.pallas import tpu as pltpu


def _attention_kernel(q_ref, k_ref, v_ref, out_ref, attn_ref, *, scale):
    # Blocks: q (bt, tq, D), k/v (bt, S, D), out (bt, tq, D), attn (bt, tq, S)
    q = q_ref[...]
    k = k_ref[...]
    v = v_ref[...]

    # scores[b, q, s] = sum_d q[b, q, d] * k[b, s, d]  (no k transpose;
    # native-dtype MXU operands, f32 accumulation; scale applied on f32 scores)
    scores = lax.dot_general(
        q, k,
        dimension_numbers=(((2,), (2,)), ((0,), (0,))),
        preferred_element_type=jnp.float32) * scale            # (bt, tq, S) f32

    # Numerically-stable softmax over the key axis (matches Softmax(dim=-1)).
    m = jnp.max(scores, axis=-1, keepdims=True)
    e = jnp.exp(scores - m)
    denom = jnp.sum(e, axis=-1, keepdims=True)
    # Exact reciprocal on the (bt, tq, 1) denominator: only bt*tq divides per
    # step, and the externally-returned weights keep full f32 accuracy.
    w = e * (1.0 / denom)                                       # f32 weights

    # attended[b, q, d] = sum_s w[b, q, s] * v[b, s, d]; weights cast to the
    # value dtype so bf16 inputs get a native-rate bf16 MXU matmul (f32 acc).
    attended = lax.dot_general(
        w.astype(v.dtype), v,
        dimension_numbers=(((2,), (1,)), ((0,), (0,))),
        preferred_element_type=jnp.float32)                     # (bt, tq, D)

    attn_ref[...] = w.astype(attn_ref.dtype)
    out_ref[...] = attended.astype(out_ref.dtype)


def _vmem_capacity_bytes():
    try:
        cap = int(pltpu.get_tpu_info().vmem_capacity_bytes)
        if cap > 0:
            return cap
    except Exception:
        pass
    return 64 * 1024 * 1024  # conservative fallback (v7x per-TensorCore size)


def _vmem_per_step(bt, tq, S, D, in_itemsize, attn_itemsize, kv_bufs):
    f32 = 4
    q_blk = 2 * bt * tq * D * in_itemsize            # double-buffered q tile
    out_blk = 2 * bt * tq * D * in_itemsize          # double-buffered out tile
    kv_blk = 2 * kv_bufs * bt * S * D * in_itemsize  # k and v blocks
    attn_blk = 2 * bt * tq * S * attn_itemsize       # double-buffered attn tile
    temps = 3 * bt * tq * S * f32                    # scores / exp / weights
    return q_blk + out_blk + kv_blk + attn_blk + temps


def _choose_tiles(B, S, D, in_itemsize, attn_itemsize, vmem_budget):
    # Query-tile candidates: sublane-aligned divisors of S (largest first),
    # plus full S (always a legal block extent).
    cands = sorted({S} | {c for c in (1024, 512, 256, 128, 64, 32, 16, 8)
                          if c < S and S % c == 0}, reverse=True)
    tq, kv_bufs = None, 2
    for bufs in (2, 1):          # prefer double-buffered K/V; drop to 1 if tight
        for cand in cands:
            if _vmem_per_step(1, cand, S, D, in_itemsize,
                              attn_itemsize, bufs) <= vmem_budget:
                tq, kv_bufs = cand, bufs
                break
        if tq is not None:
            break
    if tq is None:               # nothing fits: smallest tile, single-buffer K/V,
        tq, kv_bufs = cands[-1], 1  # and raise vmem_limit in the wrapper.

    # Pack a few batch elements per step only when the per-batch work is tiny,
    # to amortize the ~0.35 us grid-step overhead (toy shapes).
    bt = 1
    if S * S <= 128 * 128 and S * D <= 128 * 512 and tq == S:
        for cand in (8, 4, 2):
            if B % cand == 0 and _vmem_per_step(
                    cand, tq, S, D, in_itemsize, attn_itemsize,
                    kv_bufs) <= vmem_budget:
                bt = cand
                break
    return bt, tq, kv_bufs


def simple_attention(query, key, value):
    """Pallas equivalent of SimpleAttention.forward.

    query, key, value: [B, S, D].
    Returns (attended_values [B, S, D], attn_weights [B, S, S], input dtype).
    """
    B, S, D = query.shape
    assert key.shape == (B, S, D) and value.shape == (B, S, D)
    scale = float(D) ** (-0.5)

    in_itemsize = jnp.dtype(query.dtype).itemsize
    attn_dtype = query.dtype                 # matches torch softmax output dtype
    attn_itemsize = jnp.dtype(attn_dtype).itemsize

    capacity = _vmem_capacity_bytes()
    vmem_budget = int(capacity * 0.45)       # leave headroom for compiler scratch

    bt, tq, kv_bufs = _choose_tiles(B, S, D, in_itemsize, attn_itemsize,
                                    vmem_budget)
    grid = (B // bt, S // tq)

    kernel = functools.partial(_attention_kernel, scale=scale)

    out_shapes = (
        jax.ShapeDtypeStruct((B, S, D), query.dtype),   # attended values
        jax.ShapeDtypeStruct((B, S, S), attn_dtype),    # attention weights
    )

    # K/V are invariant across the inner query-tile axis; single-buffering them
    # (only when VMEM is tight) frees space for larger query/attn tiles.
    kv_kwargs = {}
    if kv_bufs == 1:
        kv_kwargs["pipeline_mode"] = pl.Buffered(1)

    grid_spec = pltpu.PrefetchScalarGridSpec(
        num_scalar_prefetch=0,
        grid=grid,
        in_specs=[
            pl.BlockSpec((bt, tq, D), lambda b, i: (b, i, 0)),             # q tile
            pl.BlockSpec((bt, S, D), lambda b, i: (b, 0, 0), **kv_kwargs),  # keys
            pl.BlockSpec((bt, S, D), lambda b, i: (b, 0, 0), **kv_kwargs),  # values
        ],
        out_specs=[
            pl.BlockSpec((bt, tq, D), lambda b, i: (b, i, 0)),
            pl.BlockSpec((bt, tq, S), lambda b, i: (b, i, 0)),
        ],
    )

    vmem_est = _vmem_per_step(bt, tq, S, D, in_itemsize, attn_itemsize, kv_bufs)
    compiler_kwargs = dict(dimension_semantics=("parallel", "parallel"))
    if vmem_est > 32 * 1024 * 1024:
        # Generation-aware cap: ~85% of physical VMEM (~108 MiB on v5e/v6e,
        # ~54 MiB on v7x) — never request the full device capacity.
        compiler_kwargs["vmem_limit_bytes"] = min(int(vmem_est * 3 // 2),
                                                  int(capacity * 0.85))

    cost = pl.CostEstimate(
        flops=4 * B * S * S * D,                        # QK^T + PV
        transcendentals=B * S * S,                      # exp
        bytes_accessed=(4 * B * S * D * in_itemsize     # q, k, v in + attended out
                        + B * S * S * attn_itemsize),   # attention weights out
    )

    return pl.pallas_call(
        kernel,
        out_shape=out_shapes,
        grid_spec=grid_spec,
        compiler_params=pltpu.CompilerParams(**compiler_kwargs),
        cost_estimate=cost,
    )(query, key, value)


def _reference(query, key, value):
    scale = float(query.shape[-1]) ** (-0.5)
    scores = jnp.einsum("bqd,bkd->bqk", query, key) * scale
    w = jax.nn.softmax(scores, axis=-1)
    return jnp.einsum("bqk,bkd->bqd", w, value), w


if __name__ == "__main__":
    B, S, D = 2, 8, 32  # batch=2, seq=8, hidden=32
    key0 = jax.random.PRNGKey(0)
    kq, kk, kv = jax.random.split(key0, 3)
    q = jax.random.normal(kq, (B, S, D), dtype=jnp.float32)
    k = jax.random.normal(kk, (B, S, D), dtype=jnp.float32)
    v = jax.random.normal(kv, (B, S, D), dtype=jnp.float32)

    attended, attn_w = simple_attention(q, k, v)
    jax.block_until_ready((attended, attn_w))

    ref_out, ref_w = _reference(q, k, v)
    assert jnp.allclose(attended, ref_out, atol=1e-4, rtol=1e-4), \
        float(jnp.max(jnp.abs(attended - ref_out)))
    assert jnp.allclose(attn_w, ref_w, atol=1e-4, rtol=1e-4), \
        float(jnp.max(jnp.abs(attn_w - ref_w)))

    print("KERNEL_OK")
</pallas_src>

<mosaic_0001>
module attributes {stable_mosaic.version = 11 : i64} {
  func.func @_attention_kernel(%arg0: i32, %arg1: i32, %arg2: memref<2x8x32xf32, #tpu.memory_space<vmem>>, %arg3: memref<2x8x32xf32, #tpu.memory_space<vmem>>, %arg4: memref<2x8x32xf32, #tpu.memory_space<vmem>>, %arg5: memref<2x8x32xf32, #tpu.memory_space<vmem>>, %arg6: memref<2x8x8xf32, #tpu.memory_space<vmem>>) attributes {dimension_semantics = [#tpu.dimension_semantics<parallel>, #tpu.dimension_semantics<parallel>], iteration_bounds = array<i64: 1, 1>, scalar_prefetch = 0 : i64, scratch_operands = 0 : i64, tpu.core_type = #tpu.core_type<tc>, window_params = [{transform_indices = @transform_0, window_bounds = array<i64: 2, 8, 32>}, {transform_indices = @transform_1, window_bounds = array<i64: 2, 8, 32>}, {transform_indices = @transform_2, window_bounds = array<i64: 2, 8, 32>}, {transform_indices = @transform_3, window_bounds = array<i64: 2, 8, 32>}, {transform_indices = @transform_4, window_bounds = array<i64: 2, 8, 8>}]} {
    %c0 = arith.constant 0 : index
    %c0_0 = arith.constant 0 : index
    %c0_1 = arith.constant 0 : index
    %0 = vector.load %arg2[%c0, %c0_0, %c0_1] : memref<2x8x32xf32, #tpu.memory_space<vmem>>, vector<2x8x32xf32>
    %c0_2 = arith.constant 0 : index
    %c0_3 = arith.constant 0 : index
    %c0_4 = arith.constant 0 : index
    %1 = vector.load %arg3[%c0_2, %c0_3, %c0_4] : memref<2x8x32xf32, #tpu.memory_space<vmem>>, vector<2x8x32xf32>
    %c0_5 = arith.constant 0 : index
    %c0_6 = arith.constant 0 : index
    %c0_7 = arith.constant 0 : index
    %2 = vector.load %arg4[%c0_5, %c0_6, %c0_7] : memref<2x8x32xf32, #tpu.memory_space<vmem>>, vector<2x8x32xf32>
    %cst = arith.constant dense<0.000000e+00> : vector<2x8x8xf32>
    %3 = tpu.matmul %0, %1, %cst {dimension_numbers = #tpu.dot_dimension_numbers<[2], [2], [1], [1], [0, 0, 0, 1, 1, 1], [0], [0]>} : vector<2x8x32xf32>, vector<2x8x32xf32>, vector<2x8x8xf32> -> vector<2x8x8xf32>
    %cst_8 = arith.constant 0.176776692 : f32
    %4 = vector.broadcast %cst_8 : f32 to vector<2x8x8xf32>
    %5 = arith.mulf %3, %4 : vector<2x8x8xf32>
    %cst_9 = arith.constant dense<0xFF800000> : vector<2x8xf32>
    %6 = vector.multi_reduction <maximumf>, %5, %cst_9 [2] : vector<2x8x8xf32> to vector<2x8xf32>
    %7 = vector.shape_cast %6 : vector<2x8xf32> to vector<2x8x1xf32>
    %8 = vector.broadcast %7 : vector<2x8x1xf32> to vector<2x8x8xf32>
    %9 = arith.subf %5, %8 : vector<2x8x8xf32>
    %10 = math.exp %9 : vector<2x8x8xf32>
    %cst_10 = arith.constant dense<0.000000e+00> : vector<2x8xf32>
    %11 = vector.multi_reduction <add>, %10, %cst_10 [2] : vector<2x8x8xf32> to vector<2x8xf32>
    %12 = vector.shape_cast %11 : vector<2x8xf32> to vector<2x8x1xf32>
    %cst_11 = arith.constant 1.000000e+00 : f32
    %13 = vector.broadcast %cst_11 : f32 to vector<2x8x1xf32>
    %14 = arith.divf %13, %12 : vector<2x8x1xf32>
    %15 = vector.broadcast %14 : vector<2x8x1xf32> to vector<2x8x8xf32>
    %16 = arith.mulf %10, %15 : vector<2x8x8xf32>
    %cst_12 = arith.constant dense<0.000000e+00> : vector<2x8x32xf32>
    %17 = tpu.matmul %16, %2, %cst_12 {dimension_numbers = #tpu.dot_dimension_numbers<[2], [1], [1], [2], [0, 0, 0, 1, 1, 2], [0], [0]>} : vector<2x8x8xf32>, vector<2x8x32xf32>, vector<2x8x32xf32> -> vector<2x8x32xf32>
    %c0_13 = arith.constant 0 : index
    %c0_14 = arith.constant 0 : index
    %c0_15 = arith.constant 0 : index
    %18 = vector.load %arg6[%c0_13, %c0_14, %c0_15] : memref<2x8x8xf32, #tpu.memory_space<vmem>>, vector<2x8x8xf32>
    tpu.vector_store %arg6[%c0_13, %c0_14, %c0_15], %16 {strides = array<i32>} : memref<2x8x8xf32, #tpu.memory_space<vmem>>, vector<2x8x8xf32>,
    %c0_16 = arith.constant 0 : index
    %c0_17 = arith.constant 0 : index
    %c0_18 = arith.constant 0 : index
    %19 = vector.load %arg5[%c0_16, %c0_17, %c0_18] : memref<2x8x32xf32, #tpu.memory_space<vmem>>, vector<2x8x32xf32>
    tpu.vector_store %arg5[%c0_16, %c0_17, %c0_18], %17 {strides = array<i32>} : memref<2x8x32xf32, #tpu.memory_space<vmem>>, vector<2x8x32xf32>,
    return
  }
  func.func @transform_0(%arg0: i32, %arg1: i32) -> (i32, i32, i32) {
    %c0_i32 = arith.constant 0 : i32
    %c0_i32_0 = arith.constant 0 : i32
    return %arg0, %arg1, %c0_i32 : i32, i32, i32
  }
  func.func @transform_1(%arg0: i32, %arg1: i32) -> (i32, i32, i32) {
    %c0_i32 = arith.constant 0 : i32
    %c0_i32_0 = arith.constant 0 : i32
    %c0_i32_1 = arith.constant 0 : i32
    return %arg0, %c0_i32, %c0_i32_0 : i32, i32, i32
  }
  func.func @transform_2(%arg0: i32, %arg1: i32) -> (i32, i32, i32) {
    %c0_i32 = arith.constant 0 : i32
    %c0_i32_0 = arith.constant 0 : i32
    %c0_i32_1 = arith.constant 0 : i32
    return %arg0, %c0_i32, %c0_i32_0 : i32, i32, i32
  }
  func.func @transform_3(%arg0: i32, %arg1: i32) -> (i32, i32, i32) {
    %c0_i32 = arith.constant 0 : i32
    %c0_i32_0 = arith.constant 0 : i32
    return %arg0, %arg1, %c0_i32 : i32, i32, i32
  }
  func.func @transform_4(%arg0: i32, %arg1: i32) -> (i32, i32, i32) {
    %c0_i32 = arith.constant 0 : i32
    %c0_i32_0 = arith.constant 0 : i32
    return %arg0, %arg1, %c0_i32 : i32, i32, i32
  }
}

</mosaic_0001>

<llo_original>
// kernel: tpu_custom_call.1
$region0: #{tpu_custom_call.1}
  #allocation0 [shape = 'u32[]', space=smem, size = 0x4, offset = 0x4, fixed_abs, tag = 'smem constant byte address 0x4 - core index']
  #allocation1 [shape = 'u32[72,128]{1,0:T(1,128)}', space=vmem, size = 0x9000, scoped, tag = 'internal scratch']
  %s0 = inlined_call_operand.hbm [shape: f32[2,8,32], index: 0, kind: input, shape index: {}]
  %s1 = inlined_call_operand.hbm [shape: f32[2,8,32], index: 1, kind: input, shape index: {}]
  %s2 = inlined_call_operand.hbm [shape: f32[2,8,32], index: 2, kind: input, shape index: {}]
  %s3 = inlined_call_operand.hbm [shape: f32[2,8,32], index: 3, kind: output, shape index: {0}]
  %s4 = inlined_call_operand.hbm [shape: f32[2,8,8], index: 4, kind: output, shape index: {1}]
  %5 = xla_tuple %s3, %s4
  %s6 = sld [smem:[#allocation0]]
  $region42: #{tpu_custom_call.1} parent=0
    _
  %s8 = ssub.s32 1, %s6
  %s9 = scalar_select 0, %s8, %s6
  $region1: #{tpu_custom_call.1} parent=0
    #allocation2 [shape = 'u8[8192]{0}', space=vmem, size = 0x2000, scoped, tag = 'input window, operand 0, single buffered']
    #allocation3 [shape = 's32[1]{0}', space=sflag, size = 0x4, scoped, tag = 'scoped memory for tpu_custom_call.1']
    #allocation4 [shape = 's32[1]{0}', space=sflag, size = 0x4, scoped, tag = 'scoped memory for tpu_custom_call.1']
    #allocation5 [shape = 'u8[8192]{0}', space=vmem, size = 0x2000, scoped, tag = 'input window, operand 1, single buffered']
    #allocation6 [shape = 's32[1]{0}', space=sflag, size = 0x4, scoped, tag = 'scoped memory for tpu_custom_call.1']
    #allocation7 [shape = 'u8[8192]{0}', space=vmem, size = 0x2000, scoped, tag = 'input window, operand 2, single buffered']
    #allocation8 [shape = 'u8[8192]{0}', space=vmem, size = 0x2000, scoped, tag = 'output window, operand 0, single buffered']
    #allocation9 [shape = 'u8[8192]{0}', space=vmem, size = 0x2000, scoped, tag = 'output window, operand 1, single buffered']
    #allocation10 [shape = 's32[1]{0}', space=sflag, size = 0x4, scoped, tag = 'scoped memory for tpu_custom_call.1']
    %10 = vsyncpa [#allocation3], 0
    %11 = vsyncpa [#allocation6], 0
    %12 = vsyncpa [#allocation4], 0
    %13 = vsyncpa [#allocation10], 0
    // Predicated region
    $region2: #{tpu_custom_call.1} parent=1 // pred_check
      _
    $region3: #{tpu_custom_call.1} parent=1 // pred_check_branch
      %15 = sbr.rel (0) target = $region5
    $region4: #{tpu_custom_call.1} parent=1 // pred_region
      %17 = vsyncadd [#allocation3], 0
      %s18 = sshll.u32 %s0, 4
      %s19 = int_to_ptr.hbm [resolvable:$true] %s18
      %s20 = sshll.u32 [#allocation2], 4
      %s21 = int_to_ptr.vmem [resolvable:$true] %s20
      %26 = dma.hbm_to_vmem [thread:$0]  %s19, 256, %s21, [#allocation3], 128, 128, 8
    $region5: #{tpu_custom_call.1} parent=1 // pred_fallthru
      _
    // Predicated region
    $region6: #{tpu_custom_call.1} parent=1 // pred_check
      _
    $region7: #{tpu_custom_call.1} parent=1 // pred_check_branch
      %28 = sbr.rel (0) target = $region9
    $region8: #{tpu_custom_call.1} parent=1 // pred_region
      %30 = vsyncadd [#allocation6], 0
      %s31 = sshll.u32 %s1, 4
      %s32 = int_to_ptr.hbm [resolvable:$true] %s31
      %s33 = sshll.u32 [#allocation5], 4
      %s34 = int_to_ptr.vmem [resolvable:$true] %s33
      %39 = dma.hbm_to_vmem [thread:$0]  %s32, 256, %s34, [#allocation6], 128, 128, 8
    $region9: #{tpu_custom_call.1} parent=1 // pred_fallthru
      _
    // Predicated region
    $region10: #{tpu_custom_call.1} parent=1 // pred_check
      _
    $region11: #{tpu_custom_call.1} parent=1 // pred_check_branch
      %41 = sbr.rel (0) target = $region13
    $region12: #{tpu_custom_call.1} parent=1 // pred_region
      %43 = vsyncadd [#allocation6], 0
      %s44 = sshll.u32 %s2, 4
      %s45 = int_to_ptr.hbm [resolvable:$true] %s44
      %s46 = sshll.u32 [#allocation7], 4
      %s47 = int_to_ptr.vmem [resolvable:$true] %s46
      %52 = dma.hbm_to_vmem [thread:$0]  %s45, 256, %s47, [#allocation6], 128, 128, 8
    $region13: #{tpu_custom_call.1} parent=1 // pred_fallthru
      _
    // Predicated region
    $region14: #{tpu_custom_call.1} parent=1 // pred_check
      _
    $region15: #{tpu_custom_call.1} parent=1 // pred_check_branch
      %54 = sbr.rel (0) target = $region17
    $region16: #{tpu_custom_call.1} parent=1 // pred_region
      %56 = dma.done [#allocation3], 256
    $region17: #{tpu_custom_call.1} parent=1 // pred_fallthru
      _
    // Predicated region
    $region18: #{tpu_custom_call.1} parent=1 // pred_check
      _
    $region19: #{tpu_custom_call.1} parent=1 // pred_check_branch
      %58 = sbr.rel (0) target = $region21
    $region20: #{tpu_custom_call.1} parent=1 // pred_region
      %60 = dma.done [#allocation6], 256
    $region21: #{tpu_custom_call.1} parent=1 // pred_fallthru
      _
    // Predicated region
    $region22: #{tpu_custom_call.1} parent=1 // pred_check
      _
    $region23: #{tpu_custom_call.1} parent=1 // pred_check_branch
      %62 = sbr.rel (0) target = $region25
    $region24: #{tpu_custom_call.1} parent=1 // pred_region
      %64 = dma.done [#allocation6], 256
    $region25: #{tpu_custom_call.1} parent=1 // pred_fallthru
      _
    %v65 = vld [vmem:[#allocation2] sm:$0xff]
    %v66 = vld [vmem:[#allocation2 + $0x8] sm:$0xff]
    %v67 = vld [vmem:[#allocation5] sm:$0xff]
    %v68 = vld [vmem:[#allocation5 + $0x8] sm:$0xff]
    %v69 = vld [vmem:[#allocation7] sm:$0xff]
    %v70 = vld [vmem:[#allocation7 + $0x8] sm:$0xff]
    %vm71 = vcmask 261120
    %v73 = vsel %vm71, %v65, 0
    %v76 = vsel %vm71, %v67, 0
    %78 = vmatpush.xpose.msra.mxu0 0.0
    %79 = vmatpush.xpose.msra.mxu0 0.0
    %80 = vmatpush.xpose.msra.mxu0 0.0
    %81 = vmatpush.xpose.msra.mxu0 0.0
    %82 = vmatpush.xpose.msra.mxu0 0.0
    %83 = vmatpush.xpose.msra.mxu0 0.0
    %84 = vmatpush.xpose.msra.mxu0 0.0
    %85 = vmatpush.xpose.msra.mxu0 0.0
    %86 = vmatpush.xpose.msra.mxu0 0.0
    %87 = vmatpush.xpose.msra.mxu0 0.0
    %88 = vmatpush.xpose.msra.mxu0 0.0
    %89 = vmatpush.xpose.msra.mxu0 0.0
    %90 = vmatpush.xpose.msra.mxu0 0.0
    %91 = vmatpush.xpose.msra.mxu0 0.0
    %92 = vmatpush.xpose.msra.mxu0 0.0
    %93 = vmatpush.xpose.msra.mxu0 %v76
    %94 = vmatmul.f32.gmra.mxu0 %v73
    %v95 = vpop.f32.mrf.mxu0
    %v96 = vadd.f32 0.0, %v95
    %97 = vdwg.mxu0
    %v99 = vsel %vm71, %v66, 0
    %v102 = vsel %vm71, %v68, 0
    %104 = vmatpush.xpose.msra.mxu0 0.0
    %105 = vmatpush.xpose.msra.mxu0 0.0
    %106 = vmatpush.xpose.msra.mxu0 0.0
    %107 = vmatpush.xpose.msra.mxu0 0.0
    %108 = vmatpush.xpose.msra.mxu0 0.0
    %109 = vmatpush.xpose.msra.mxu0 0.0
    %110 = vmatpush.xpose.msra.mxu0 0.0
    %111 = vmatpush.xpose.msra.mxu0 0.0
    %112 = vmatpush.xpose.msra.mxu0 0.0
    %113 = vmatpush.xpose.msra.mxu0 0.0
    %114 = vmatpush.xpose.msra.mxu0 0.0
    %115 = vmatpush.xpose.msra.mxu0 0.0
    %116 = vmatpush.xpose.msra.mxu0 0.0
    %117 = vmatpush.xpose.msra.mxu0 0.0
    %118 = vmatpush.xpose.msra.mxu0 0.0
    %119 = vmatpush.xpose.msra.mxu0 %v102
    %120 = vmatmul.f32.gmra.mxu0 %v99
    %v121 = vpop.f32.mrf.mxu0
    %v122 = vadd.f32 0.0, %v121
    %123 = vdwg.mxu0
    %v124 = vmul.f32 %v96, 0.17677669
    %v125 = vmul.f32 %v122, 0.17677669
    %vm126 = vcmask 64512
    %v127 = vsel %vm126, %v124, -inf
    %128 = vmax.xlane.f32.xlu0 %v127
    %v129 = vpop.xlane.xlu0 %128
    %v130 = vsel %vm126, %v125, -inf
    %131 = vmax.xlane.f32.xlu0 %v130
    %v132 = vpop.xlane.xlu0 %131
    %v133 = vsub.f32 %v124, %v129
    %v134 = vsub.f32 %v125, %v132
    %v135 = vmul.f32 %v133, 1.442695
    %v136 = vpow.pop %v135
    %v137 = vmul.f32 %v134, 1.442695
    %v138 = vpow.pop %v137
    %v139 = vsel %vm126, %v136, 0.0
    %140 = vadd.xlane.f32.xlu0 %v139
    %v141 = vpop.xlane.xlu0 %140
    %v142 = vsel %vm126, %v138, 0.0
    %143 = vadd.xlane.f32.xlu0 %v142
    %v144 = vpop.xlane.xlu0 %143
    %v145 = vrcp.pop %v141
    %v146 = vmul.f32 %v141, %v145
    %v147 = vsub.f32 1.0, %v146
    %v148 = vmul.f32 %v145, %v147
    %v149 = vadd.f32 %v145, %v148
    %vm150 = vweird.f32 %v141
    %vm151 = vweird.f32 %v145
    %vm152 = vmor %vm150, %vm151
    %v153 = vsel %vm152, %v145, %v149
    %v154 = vand.u32 2147483647, %v141
    %vm155 = vcmp.eq.f32.partialorder %v154, 8.507059e+37
    %v156 = vand.u32 %v141, 2147483648
    %v157 = vor.u32 1.1754944e-38, %v156
    %v158 = vsel %vm155, %v157, %v153
    %v159 = vmul.f32 1.0, %v158
    %v160 = vrcp.pop %v144
    %v161 = vmul.f32 %v144, %v160
    %v162 = vsub.f32 1.0, %v161
    %v163 = vmul.f32 %v160, %v162
    %v164 = vadd.f32 %v160, %v163
    %vm165 = vweird.f32 %v144
    %vm166 = vweird.f32 %v160
    %vm167 = vmor %vm165, %vm166
    %v168 = vsel %vm167, %v160, %v164
    %v169 = vand.u32 2147483647, %v144
    %vm170 = vcmp.eq.f32.partialorder %v169, 8.507059e+37
    %v171 = vand.u32 %v144, 2147483648
    %v172 = vor.u32 1.1754944e-38, %v171
    %v173 = vsel %vm170, %v172, %v168
    %v174 = vmul.f32 1.0, %v173
    %v175 = vmul.f32 %v136, %v159
    %v176 = vmul.f32 %v138, %v174
    %v178 = vsel %vm126, %v175, 0
    %180 = vmatpush.msra.mxu0 0.0
    %181 = vmatpush.msra.mxu0 0.0
    %182 = vmatpush.msra.mxu0 0.0
    %183 = vmatpush.msra.mxu0 0.0
    %184 = vmatpush.msra.mxu0 0.0
    %185 = vmatpush.msra.mxu0 0.0
    %186 = vmatpush.msra.mxu0 0.0
    %187 = vmatpush.msra.mxu0 0.0
    %188 = vmatpush.msra.mxu0 0.0
    %189 = vmatpush.msra.mxu0 0.0
    %190 = vmatpush.msra.mxu0 0.0
    %191 = vmatpush.msra.mxu0 0.0
    %192 = vmatpush.msra.mxu0 0.0
    %193 = vmatpush.msra.mxu0 0.0
    %194 = vmatpush.msra.mxu0 0.0
    %195 = vmatpush.msra.mxu0 %v69
    %196 = vmatmul.f32.gmra.mxu0 %v178
    %v197 = vpop.f32.mrf.mxu0
    %v198 = vadd.f32 0.0, %v197
    %199 = vdwg.mxu0
    %v201 = vsel %vm126, %v176, 0
    %203 = vmatpush.msra.mxu0 0.0
    %204 = vmatpush.msra.mxu0 0.0
    %205 = vmatpush.msra.mxu0 0.0
    %206 = vmatpush.msra.mxu0 0.0
    %207 = vmatpush.msra.mxu0 0.0
    %208 = vmatpush.msra.mxu0 0.0
    %209 = vmatpush.msra.mxu0 0.0
    %210 = vmatpush.msra.mxu0 0.0
    %211 = vmatpush.msra.mxu0 0.0
    %212 = vmatpush.msra.mxu0 0.0
    %213 = vmatpush.msra.mxu0 0.0
    %214 = vmatpush.msra.mxu0 0.0
    %215 = vmatpush.msra.mxu0 0.0
    %216 = vmatpush.msra.mxu0 0.0
    %217 = vmatpush.msra.mxu0 0.0
    %218 = vmatpush.msra.mxu0 %v70
    %219 = vmatmul.f32.gmra.mxu0 %v201
    %v220 = vpop.f32.mrf.mxu0
    %v221 = vadd.f32 0.0, %v220
    %222 = vdwg.mxu0
    %223 = vst.msk [vmem:[#allocation9] sm:$0xff] %vm126, %v175
    %224 = vst.msk [vmem:[#allocation9 + $0x8] sm:$0xff] %vm126, %v176
    %225 = vst.msk [vmem:[#allocation8] sm:$0xff] %vm71, %v198
    %226 = vst.msk [vmem:[#allocation8 + $0x8] sm:$0xff] %vm71, %v221
    // Predicated region
    $region26: #{tpu_custom_call.1} parent=1 // pred_check
      _
    $region27: #{tpu_custom_call.1} parent=1 // pred_check_branch
      %228 = sbr.rel (0) target = $region29
    $region28: #{tpu_custom_call.1} parent=1 // pred_region
      %230 = vsyncadd [#allocation4], 0
      %s231 = sshll.u32 [#allocation8], 4
      %s232 = int_to_ptr.vmem [resolvable:$true] %s231
      %s233 = sshll.u32 %s3, 4
      %s234 = int_to_ptr.hbm [resolvable:$true] %s233
      %239 = dma.vmem_to_hbm [thread:$0]  %s232, 256, %s234, [#allocation4], 128, 128, 8
    $region29: #{tpu_custom_call.1} parent=1 // pred_fallthru
      _
    // Predicated region
    $region30: #{tpu_custom_call.1} parent=1 // pred_check
      _
    $region31: #{tpu_custom_call.1} parent=1 // pred_check_branch
      %241 = sbr.rel (0) target = $region33
    $region32: #{tpu_custom_call.1} parent=1 // pred_region
      %243 = vsyncadd [#allocation10], 0
      %s244 = sshll.u32 [#allocation9], 4
      %s245 = int_to_ptr.vmem [resolvable:$true] %s244
      %s246 = sshll.u32 %s4, 4
      %s247 = int_to_ptr.hbm [resolvable:$true] %s246
      %252 = dma.vmem_to_hbm [thread:$0]  %s245, 256, %s247, [#allocation10], 128, 128, 8
    $region33: #{tpu_custom_call.1} parent=1 // pred_fallthru
      _
    // Predicated region
    $region34: #{tpu_custom_call.1} parent=1 // pred_check
      _
    $region35: #{tpu_custom_call.1} parent=1 // pred_check_branch
      %254 = sbr.rel (0) target = $region37
    $region36: #{tpu_custom_call.1} parent=1 // pred_region
      %256 = dma.done [#allocation4], 256
    $region37: #{tpu_custom_call.1} parent=1 // pred_fallthru
      _
    // Predicated region
    $region38: #{tpu_custom_call.1} parent=1 // pred_check
      _
    $region39: #{tpu_custom_call.1} parent=1 // pred_check_branch
      %258 = sbr.rel (0) target = $region41
    $region40: #{tpu_custom_call.1} parent=1 // pred_region
      %260 = dma.done [#allocation10], 256
    $region41: #{tpu_custom_call.1} parent=1 // pred_fallthru
      _
    %261 = vsyncpa [#allocation3], 1
    %262 = vsyncpa [#allocation6], 1
    %263 = vsyncpa [#allocation4], 1
    %264 = vsyncpa [#allocation10], 1

</llo_original>
